<compile_context>
chip_gen: v7x
topology: tpu7x:2x2x1
jax: 0.10.0
libtpu: 0.0.40
codegen_flags: <defaults>
</compile_context>

<pallas_src>
import jax
import jax.numpy as jnp
from jax.experimental import pallas as pl
from jax.experimental.pallas import tpu as pltpu


def _round_up(v, m):
    return ((v + m - 1) // m) * m


def _block_diag(w, pack):
    """blockdiag(w, ..., w) with `pack` copies (pack == 1 -> w unchanged)."""
    if pack == 1:
        return w
    return jnp.kron(jnp.eye(pack, dtype=w.dtype), w)


def _ebgeo_feature_kernel(lmx_ref, lmy_ref, w1x_ref, w1y_ref, b1_ref,
                          w2_ref, b2_ref, o_ref):
    # lmx_ref : [bt, pack*dim_in]   row-pair packed lm_X tile
    # lmy_ref : [bt, pack*dim_y]    row-pair packed lm_Y tile
    # w1x_ref : [pack*dim_in, pack*dim_as]   blockdiag(W1[:dim_in].T)
    # w1y_ref : [pack*dim_y,  pack*dim_as]   blockdiag(W1[dim_in:].T)
    # b1_ref  : [1, pack*dim_as]             tiled bias
    # w2_ref  : [pack*dim_as, pack*dim_as]   blockdiag(W2.T)
    # b2_ref  : [1, pack*dim_as]
    # o_ref   : [bt, pack*dim_as]            lane-dense (128-wide) output tile

    # fc1: torch.cat folded into two MXU accumulations (f32 accumulation).
    h = jnp.dot(lmx_ref[...], w1x_ref[...], preferred_element_type=jnp.float32)
    h = h + jnp.dot(lmy_ref[...], w1y_ref[...],
                    preferred_element_type=jnp.float32)
    # Bias add + ReLU in f32 (works for bf16 I/O on v5e too).
    h = jnp.maximum(h + b1_ref[...].astype(jnp.float32), 0.0)

    # fc2 (block-diagonal weight keeps the row-pair lanes independent).
    y = jnp.dot(h.astype(w2_ref.dtype), w2_ref[...],
                preferred_element_type=jnp.float32)
    y = jnp.maximum(y + b2_ref[...].astype(jnp.float32), 0.0)

    o_ref[...] = y.astype(o_ref.dtype)


def ebgeo_feature_net(lm_X, lm_Y, w1_t, b1, w2_t, b2, *, tile_n=8192):
    """Pallas wrapper.

    lm_X: [N, dim_in], lm_Y: [N, dim_y] (dim_y == 2 in the module),
    w1_t: [dim_z, dim_as] (pre-transposed), b1: [dim_as],
    w2_t: [dim_as, dim_as] (pre-transposed), b2: [dim_as].
    """
    n, dim_in = lm_X.shape
    dim_y = lm_Y.shape[1]
    dim_z, dim_as = w1_t.shape
    assert dim_z == dim_in + dim_y, (dim_z, dim_in, dim_y)
    out_dtype = lm_X.dtype

    # Lane-dense packing factor: fold `pack` consecutive batch rows into the
    # lane axis so the output block is 128 lanes wide (dim_as=64 -> pack=2).
    if dim_as < 128 and 128 % dim_as == 0:
        pack = 128 // dim_as
    else:
        pack = 1  # already lane-dense (or not evenly packable): plain layout

    # Split fc1 weight (avoids the concat) and expand to block-diagonal form
    # for the row-packed layout.  pack == 1 leaves everything unchanged.
    w1_x = _block_diag(w1_t[:dim_in], pack)      # [pack*dim_in, pack*dim_as]
    w1_y = _block_diag(w1_t[dim_in:], pack)      # [pack*dim_y,  pack*dim_as]
    w2_p = _block_diag(w2_t, pack)               # [pack*dim_as, pack*dim_as]
    b1_p = jnp.tile(b1.reshape(1, dim_as), (1, pack))
    b2_p = jnp.tile(b2.reshape(1, dim_as), (1, pack))

    # Pad the batch to a multiple of `pack`, then fold row groups into lanes
    # (row-major contiguous reshape: no data reordering in HBM).
    n_pad = _round_up(n, pack)
    if n_pad != n:
        lm_X = jnp.pad(lm_X, ((0, n_pad - n), (0, 0)))
        lm_Y = jnp.pad(lm_Y, ((0, n_pad - n), (0, 0)))
    np_rows = n_pad // pack
    lm_Xp = lm_X.reshape(np_rows, pack * dim_in)
    lm_Yp = lm_Y.reshape(np_rows, pack * dim_y)

    # Batch tile: large (amortizes ~600-cycle per-step overhead), aligned to the
    # packed sublane granule, capped at 16384 rows (double-buffered blocks stay
    # well under v5e's 16 MiB default scoped VMEM), and capped so big batches
    # keep >= ~4 grid steps (both v7x TensorCores get work via "parallel").
    row_align = 8 * pack
    tile_n = _round_up(max(int(tile_n), row_align), row_align)
    tile_n = min(tile_n, 16384)
    tile_n = min(tile_n, _round_up(n_pad, row_align))
    steps_cap = _round_up(max(2048, pl.cdiv(n_pad, 4)), row_align)
    tile_n = min(tile_n, steps_cap)
    bt = tile_n // pack                           # packed rows per grid step
    grid = (pl.cdiv(np_rows, bt),)

    itemsize = jnp.dtype(out_dtype).itemsize
    flops = 2 * n * (dim_z * dim_as + dim_as * dim_as)
    bytes_accessed = itemsize * (
        n * (dim_in + dim_y + dim_as)                       # activations in/out
        + dim_z * dim_as + dim_as * dim_as + 2 * dim_as)    # weights / biases

    out_packed = pl.pallas_call(
        _ebgeo_feature_kernel,
        out_shape=jax.ShapeDtypeStruct((np_rows, pack * dim_as), out_dtype),
        grid=grid,
        in_specs=[
            pl.BlockSpec((bt, pack * dim_in), lambda i: (i, 0)),       # lm_X tile
            pl.BlockSpec((bt, pack * dim_y), lambda i: (i, 0)),        # lm_Y tile
            pl.BlockSpec((pack * dim_in, pack * dim_as), lambda i: (0, 0)),  # W1x
            pl.BlockSpec((pack * dim_y, pack * dim_as), lambda i: (0, 0)),   # W1y
            pl.BlockSpec((1, pack * dim_as), lambda i: (0, 0)),              # b1
            pl.BlockSpec((pack * dim_as, pack * dim_as), lambda i: (0, 0)),  # W2
            pl.BlockSpec((1, pack * dim_as), lambda i: (0, 0)),              # b2
        ],
        out_specs=pl.BlockSpec((bt, pack * dim_as), lambda i: (i, 0)),
        compiler_params=pltpu.CompilerParams(
            dimension_semantics=("parallel",)),
        cost_estimate=pl.CostEstimate(
            flops=flops, transcendentals=0, bytes_accessed=bytes_accessed),
    )(lm_Xp, lm_Yp, w1_x, w1_y, b1_p, w2_p, b2_p)

    # Unfold the lane-packed rows back to [N, dim_as] (contiguous reshape) and
    # drop any batch padding.
    out = out_packed.reshape(n_pad, dim_as)
    return out[:n] if n_pad != n else out


def init_params(key, dim_in, dtype=jnp.float32):
    """Deterministic init mimicking nn.Linear default (uniform +-1/sqrt(fan_in))."""
    dim_z = dim_in + 2
    dim_as = dim_z * 2
    k1, k2, k3, k4 = jax.random.split(key, 4)
    bound1 = 1.0 / jnp.sqrt(dim_z)
    bound2 = 1.0 / jnp.sqrt(dim_as)
    # Stored pre-transposed: [in, out]
    w1_t = jax.random.uniform(k1, (dim_z, dim_as), dtype, -bound1, bound1)
    b1 = jax.random.uniform(k2, (dim_as,), dtype, -bound1, bound1)
    w2_t = jax.random.uniform(k3, (dim_as, dim_as), dtype, -bound2, bound2)
    b2 = jax.random.uniform(k4, (dim_as,), dtype, -bound2, bound2)
    return w1_t, b1, w2_t, b2


def reference(lm_X, lm_Y, w1_t, b1, w2_t, b2):
    x = jnp.concatenate([lm_X, lm_Y], axis=1)
    h = jax.nn.relu(x @ w1_t + b1)
    return jax.nn.relu(h @ w2_t + b2)


if __name__ == "__main__":
    dim_in = 30          # -> dim_z = 32, dim_as = 64, pack = 2
    n = 48               # batch of landmark rows

    key = jax.random.PRNGKey(0)
    kx, ky, kp = jax.random.split(key, 3)
    lm_X = jax.random.normal(kx, (n, dim_in), jnp.float32)
    lm_Y = jax.random.normal(ky, (n, 2), jnp.float32)
    w1_t, b1, w2_t, b2 = init_params(kp, dim_in)

    ref = reference(lm_X, lm_Y, w1_t, b1, w2_t, b2)

    # 1) Small tile so the grid actually has several steps (3 tiles of 16 rows).
    out = jax.block_until_ready(
        ebgeo_feature_net(lm_X, lm_Y, w1_t, b1, w2_t, b2, tile_n=16))
    assert out.shape == (n, (dim_in + 2) * 2), out.shape
    assert jnp.allclose(out, ref, atol=1e-5, rtol=1e-5), "f32 mismatch"

    # 2) Default (large) tile with an odd batch: exercises pad/unpack path.
    out_odd = jax.block_until_ready(
        ebgeo_feature_net(lm_X[:47], lm_Y[:47], w1_t, b1, w2_t, b2))
    assert out_odd.shape == (47, (dim_in + 2) * 2), out_odd.shape
    assert jnp.allclose(out_odd, ref[:47], atol=1e-5, rtol=1e-5), "odd-N mismatch"

    # 3) bf16 I/O smoke test (f32 accumulation / f32 bias+ReLU inside).
    bf = jnp.bfloat16
    out_bf16 = jax.block_until_ready(
        ebgeo_feature_net(lm_X.astype(bf), lm_Y.astype(bf),
                          w1_t.astype(bf), b1.astype(bf),
                          w2_t.astype(bf), b2.astype(bf)))
    ref_bf16 = reference(lm_X.astype(bf).astype(jnp.float32),
                         lm_Y.astype(bf).astype(jnp.float32),
                         w1_t.astype(bf).astype(jnp.float32),
                         b1.astype(bf).astype(jnp.float32),
                         w2_t.astype(bf).astype(jnp.float32),
                         b2.astype(bf).astype(jnp.float32))
    assert out_bf16.dtype == bf
    assert jnp.allclose(out_bf16.astype(jnp.float32), ref_bf16,
                        atol=0.1, rtol=0.1), "bf16 mismatch"

    print("KERNEL_OK")
</pallas_src>

<mosaic_0001>
module attributes {stable_mosaic.version = 11 : i64} {
  func.func @_ebgeo_feature_kernel(%arg0: i32, %arg1: memref<8x60xf32, #tpu.memory_space<vmem>>, %arg2: memref<8x4xf32, #tpu.memory_space<vmem>>, %arg3: memref<60x128xf32, #tpu.memory_space<vmem>>, %arg4: memref<4x128xf32, #tpu.memory_space<vmem>>, %arg5: memref<1x128xf32, #tpu.memory_space<vmem>>, %arg6: memref<128x128xf32, #tpu.memory_space<vmem>>, %arg7: memref<1x128xf32, #tpu.memory_space<vmem>>, %arg8: memref<8x128xf32, #tpu.memory_space<vmem>>) attributes {dimension_semantics = [#tpu.dimension_semantics<parallel>], iteration_bounds = array<i64: 3>, scalar_prefetch = 0 : i64, scratch_operands = 0 : i64, tpu.core_type = #tpu.core_type<tc>, window_params = [{transform_indices = @transform_0, window_bounds = array<i64: 8, 60>}, {transform_indices = @transform_1, window_bounds = array<i64: 8, 4>}, {pipeline_mode = #tpu.pipeline_mode<synchronous>, transform_indices = @transform_2, window_bounds = array<i64: 60, 128>}, {pipeline_mode = #tpu.pipeline_mode<synchronous>, transform_indices = @transform_3, window_bounds = array<i64: 4, 128>}, {pipeline_mode = #tpu.pipeline_mode<synchronous>, transform_indices = @transform_4, window_bounds = array<i64: 1, 128>}, {pipeline_mode = #tpu.pipeline_mode<synchronous>, transform_indices = @transform_5, window_bounds = array<i64: 128, 128>}, {pipeline_mode = #tpu.pipeline_mode<synchronous>, transform_indices = @transform_6, window_bounds = array<i64: 1, 128>}, {transform_indices = @transform_7, window_bounds = array<i64: 8, 128>}]} {
    %c0 = arith.constant 0 : index
    %c0_0 = arith.constant 0 : index
    %0 = vector.load %arg1[%c0, %c0_0] : memref<8x60xf32, #tpu.memory_space<vmem>>, vector<8x60xf32>
    %c0_1 = arith.constant 0 : index
    %c0_2 = arith.constant 0 : index
    %1 = vector.load %arg3[%c0_1, %c0_2] : memref<60x128xf32, #tpu.memory_space<vmem>>, vector<60x128xf32>
    %cst = arith.constant dense<0.000000e+00> : vector<8x128xf32>
    %2 = tpu.matmul %0, %1, %cst {dimension_numbers = #tpu.dot_dimension_numbers<[1], [0], [0], [1], [0, 0, 1, 1], [], []>} : vector<8x60xf32>, vector<60x128xf32>, vector<8x128xf32> -> vector<8x128xf32>
    %c0_3 = arith.constant 0 : index
    %c0_4 = arith.constant 0 : index
    %3 = vector.load %arg2[%c0_3, %c0_4] : memref<8x4xf32, #tpu.memory_space<vmem>>, vector<8x4xf32>
    %c0_5 = arith.constant 0 : index
    %c0_6 = arith.constant 0 : index
    %4 = vector.load %arg4[%c0_5, %c0_6] : memref<4x128xf32, #tpu.memory_space<vmem>>, vector<4x128xf32>
    %cst_7 = arith.constant dense<0.000000e+00> : vector<8x128xf32>
    %5 = tpu.matmul %3, %4, %cst_7 {dimension_numbers = #tpu.dot_dimension_numbers<[1], [0], [0], [1], [0, 0, 1, 1], [], []>} : vector<8x4xf32>, vector<4x128xf32>, vector<8x128xf32> -> vector<8x128xf32>
    %6 = arith.addf %2, %5 : vector<8x128xf32>
    %c0_8 = arith.constant 0 : index
    %c0_9 = arith.constant 0 : index
    %7 = vector.load %arg5[%c0_8, %c0_9] : memref<1x128xf32, #tpu.memory_space<vmem>>, vector<1x128xf32>
    %8 = vector.broadcast %7 : vector<1x128xf32> to vector<8x128xf32>
    %9 = arith.addf %6, %8 : vector<8x128xf32>
    %cst_10 = arith.constant 0.000000e+00 : f32
    %10 = vector.broadcast %cst_10 : f32 to vector<8x128xf32>
    %11 = arith.maximumf %9, %10 : vector<8x128xf32>
    %c0_11 = arith.constant 0 : index
    %c0_12 = arith.constant 0 : index
    %12 = vector.load %arg6[%c0_11, %c0_12] : memref<128x128xf32, #tpu.memory_space<vmem>>, vector<128x128xf32>
    %cst_13 = arith.constant dense<0.000000e+00> : vector<8x128xf32>
    %13 = tpu.matmul %11, %12, %cst_13 {dimension_numbers = #tpu.dot_dimension_numbers<[1], [0], [0], [1], [0, 0, 1, 1], [], []>} : vector<8x128xf32>, vector<128x128xf32>, vector<8x128xf32> -> vector<8x128xf32>
    %c0_14 = arith.constant 0 : index
    %c0_15 = arith.constant 0 : index
    %14 = vector.load %arg7[%c0_14, %c0_15] : memref<1x128xf32, #tpu.memory_space<vmem>>, vector<1x128xf32>
    %15 = vector.broadcast %14 : vector<1x128xf32> to vector<8x128xf32>
    %16 = arith.addf %13, %15 : vector<8x128xf32>
    %cst_16 = arith.constant 0.000000e+00 : f32
    %17 = vector.broadcast %cst_16 : f32 to vector<8x128xf32>
    %18 = arith.maximumf %16, %17 : vector<8x128xf32>
    %c0_17 = arith.constant 0 : index
    %c0_18 = arith.constant 0 : index
    %19 = vector.load %arg8[%c0_17, %c0_18] : memref<8x128xf32, #tpu.memory_space<vmem>>, vector<8x128xf32>
    tpu.vector_store %arg8[%c0_17, %c0_18], %18 {strides = array<i32>} : memref<8x128xf32, #tpu.memory_space<vmem>>, vector<8x128xf32>,
    return
  }
  func.func @transform_0(%arg0: i32) -> (i32, i32) {
    %c0_i32 = arith.constant 0 : i32
    %c0_i32_0 = arith.constant 0 : i32
    return %arg0, %c0_i32 : i32, i32
  }
  func.func @transform_1(%arg0: i32) -> (i32, i32) {
    %c0_i32 = arith.constant 0 : i32
    %c0_i32_0 = arith.constant 0 : i32
    return %arg0, %c0_i32 : i32, i32
  }
  func.func @transform_2(%arg0: i32) -> (i32, i32) {
    %c0_i32 = arith.constant 0 : i32
    %c0_i32_0 = arith.constant 0 : i32
    %c0_i32_1 = arith.constant 0 : i32
    return %c0_i32, %c0_i32_0 : i32, i32
  }
  func.func @transform_3(%arg0: i32) -> (i32, i32) {
    %c0_i32 = arith.constant 0 : i32
    %c0_i32_0 = arith.constant 0 : i32
    %c0_i32_1 = arith.constant 0 : i32
    return %c0_i32, %c0_i32_0 : i32, i32
  }
  func.func @transform_4(%arg0: i32) -> (i32, i32) {
    %c0_i32 = arith.constant 0 : i32
    %c0_i32_0 = arith.constant 0 : i32
    %c0_i32_1 = arith.constant 0 : i32
    return %c0_i32, %c0_i32_0 : i32, i32
  }
  func.func @transform_5(%arg0: i32) -> (i32, i32) {
    %c0_i32 = arith.constant 0 : i32
    %c0_i32_0 = arith.constant 0 : i32
    %c0_i32_1 = arith.constant 0 : i32
    return %c0_i32, %c0_i32_0 : i32, i32
  }
  func.func @transform_6(%arg0: i32) -> (i32, i32) {
    %c0_i32 = arith.constant 0 : i32
    %c0_i32_0 = arith.constant 0 : i32
    %c0_i32_1 = arith.constant 0 : i32
    return %c0_i32, %c0_i32_0 : i32, i32
  }
  func.func @transform_7(%arg0: i32) -> (i32, i32) {
    %c0_i32 = arith.constant 0 : i32
    %c0_i32_0 = arith.constant 0 : i32
    return %arg0, %c0_i32 : i32, i32
  }
}

</mosaic_0001>

<llo_original>
// kernel: tpu_custom_call.1
$region0: #{tpu_custom_call.1}
  #allocation0 [shape = 'u32[]', space=smem, size = 0x4, offset = 0x4, fixed_abs, tag = 'smem constant byte address 0x4 - core index']
  #allocation1 [shape = 'u32[144,128]{1,0:T(1,128)}', space=vmem, size = 0x12000, scoped, tag = 'internal scratch']
  %s0 = inlined_call_operand.vmem [shape: f32[24,60], index: 0, kind: input, shape index: {}]
  %s1 = inlined_call_operand.vmem [shape: f32[24,4], index: 1, kind: input, shape index: {}]
  %s2 = inlined_call_operand.hbm [shape: f32[60,128], index: 2, kind: input, shape index: {}]
  %s3 = inlined_call_operand.vmem [shape: f32[4,128], index: 3, kind: input, shape index: {}]
  %s4 = inlined_call_operand.vmem [shape: f32[1,128], index: 4, kind: input, shape index: {}]
  %s5 = inlined_call_operand.hbm [shape: f32[128,128], index: 5, kind: input, shape index: {}]
  %s6 = inlined_call_operand.vmem [shape: f32[1,128], index: 6, kind: input, shape index: {}]
  %s7 = inlined_call_operand.hbm [shape: f32[24,128], index: 7, kind: output, shape index: {}]
  %s8 = sld [smem:[#allocation0]]
  $region69: #{tpu_custom_call.1} parent=0
    _
  %s10 = ssub.s32 1, %s8
  %s11 = scalar_select 0, %s10, %s8
  $region1: #{tpu_custom_call.1} parent=0
    #allocation2 [shape = 'u8[32768]{0}', space=vmem, size = 0x8000, scoped, tag = 'input window, operand 2, single buffered']
    #allocation3 [shape = 's32[2]{0}', space=sflag, size = 0x8, scoped, tag = 'scoped memory for tpu_custom_call.1']
    #allocation4 [shape = 's32[2]{0}', space=sflag, size = 0x8, scoped, tag = 'scoped memory for tpu_custom_call.1']
    #allocation5 [shape = 'u8[65536]{0}', space=vmem, size = 0x10000, scoped, tag = 'input window, operand 5, single buffered']
    #allocation6 [shape = 's32[1]{0}', space=sflag, size = 0x4, scoped, tag = 'scoped memory for tpu_custom_call.1']
    #allocation7 [shape = 'u8[8192]{0}', space=vmem, size = 0x2000, scoped, tag = 'output window, operand 0']
    %12 = vsyncpa [#allocation3], 0
    %13 = vsyncpa [#allocation6], 0
    %14 = vsyncpa [#allocation4], 0
    %s15 = scalar_lea.sflag [#allocation4], 1
    %16 = vsyncpa %s15, 0
    loop: start=0, step=1, limit=5
    $region2: #{tpu_custom_call.1} parent=1 // loop_pre_header
      _
    $region3: #{tpu_custom_call.1} parent=1 // loop_header
      %s18 = sphi 0, %s22
      %p19 = scmp.ge.s32.totalorder %s18, 5
      %s28 = sphi 0, %s30
      %s31 = sphi 0, %s28
      %s32 = sphi 0, %s31
      %s48 = sphi 0, %s32
      %s54 = sphi 0, %s56
      %s57 = sphi 0, %s54
      %s58 = sphi 0, %s57
      %s74 = sphi 0, %s58
      %s78 = sphi 0, %s78
      %s80 = sphi 0, %s78
      %s81 = sphi 0, %s80
      %s95 = sphi 0, %s81
      %s99 = sphi 0, %s99
      %s101 = sphi 0, %s99
      %s102 = sphi 0, %s101
      %s116 = sphi 0, %s102
      %s120 = sphi 0, %s120
      %s122 = sphi 0, %s120
      %s123 = sphi 0, %s122
      %s137 = sphi 0, %s123
      %s141 = sphi 0, %s141
      %s143 = sphi 0, %s141
      %s144 = sphi 0, %s143
      %s158 = sphi 0, %s144
      %s162 = sphi 0, %s162
      %s164 = sphi 0, %s162
      %s165 = sphi 0, %s164
      %s179 = sphi 0, %s165
      %s185 = sphi 0, %s187
      %s188 = sphi 0, %s185
      %s189 = sphi 0, %s188
      %s205 = sphi 0, %s189
    $region4: #{tpu_custom_call.1} parent=1 // loop_header_branch
      %21 = sbr.rel (%p19) target = $region8
    $region5: #{tpu_custom_call.1} parent=1 // loop_body
      %s23 = ssub.s32 %s18, 1
      %s24 = ssub.s32 %s18, 2
      %s25 = sadd.s32 %s18, 1
      %s26 = ssub.s32 %s18, %s25
      %p27 = scmp.eq.s32.totalorder %s26, 0
      %s29 = sadd.s32 %s28, 1
      %s30 = scalar_select %p27, %s28, %s29
      %p33 = pneg %p27
      %p34 = scmp.eq.s32.totalorder %s18, 2
      %p35 = por %p33, %p34
      %p36 = scmp.ne.s32.totalorder %s28, %s31
      %p37 = scmp.eq.s32.totalorder %s18, 0
      %p38 = por %p36, %p37
      %p39 = scmp.ne.s32.totalorder %s28, %s31
      %p40 = scmp.eq.s32.totalorder %s23, 2
      %p41 = por %p39, %p40
      %p42 = scmp.ne.s32.totalorder %s31, %s32
      %p43 = scmp.eq.s32.totalorder %s23, 0
      %p44 = por %p42, %p43
      %p45 = scmp.ne.s32.totalorder %s31, %s32
      %p46 = scmp.eq.s32.totalorder %s24, 2
      %p47 = por %p45, %p46
      %p49 = scmp.ne.s32.totalorder %s32, %s48
      %p50 = scmp.eq.s32.totalorder %s24, 0
      %p51 = por %p49, %p50
      %s52 = ssub.s32 %s18, %s25
      %p53 = scmp.eq.s32.totalorder %s52, 0
      %s55 = sadd.s32 %s54, 1
      %s56 = scalar_select %p53, %s54, %s55
      %p59 = pneg %p53
      %p60 = scmp.eq.s32.totalorder %s18, 2
      %p61 = por %p59, %p60
      %p62 = scmp.ne.s32.totalorder %s54, %s57
      %p63 = scmp.eq.s32.totalorder %s18, 0
      %p64 = por %p62, %p63
      %p65 = scmp.ne.s32.totalorder %s54, %s57
      %p66 = scmp.eq.s32.totalorder %s23, 2
      %p67 = por %p65, %p66
      %p68 = scmp.ne.s32.totalorder %s57, %s58
      %p69 = scmp.eq.s32.totalorder %s23, 0
      %p70 = por %p68, %p69
      %p71 = scmp.ne.s32.totalorder %s57, %s58
      %p72 = scmp.eq.s32.totalorder %s24, 2
      %p73 = por %p71, %p72
      %p75 = scmp.ne.s32.totalorder %s58, %s74
      %p76 = scmp.eq.s32.totalorder %s24, 0
      %p77 = por %p75, %p76
      %s79 = sadd.s32 %s78, 1
      %p82 = scmp.eq.s32.totalorder %s18, 2
      %p83 = scmp.ne.s32.totalorder %s78, %s80
      %p84 = scmp.eq.s32.totalorder %s18, 0
      %p85 = por %p83, %p84
      %p86 = scmp.ne.s32.totalorder %s78, %s80
      %p87 = scmp.eq.s32.totalorder %s23, 2
      %p88 = por %p86, %p87
      %p89 = scmp.ne.s32.totalorder %s80, %s81
      %p90 = scmp.eq.s32.totalorder %s23, 0
      %p91 = por %p89, %p90
      %p92 = scmp.ne.s32.totalorder %s80, %s81
      %p93 = scmp.eq.s32.totalorder %s24, 2
      %p94 = por %p92, %p93
      %p96 = scmp.ne.s32.totalorder %s81, %s95
      %p97 = scmp.eq.s32.totalorder %s24, 0
      %p98 = por %p96, %p97
      %s100 = sadd.s32 %s99, 1
      %p103 = scmp.eq.s32.totalorder %s18, 2
      %p104 = scmp.ne.s32.totalorder %s99, %s101
      %p105 = scmp.eq.s32.totalorder %s18, 0
      %p106 = por %p104, %p105
      %p107 = scmp.ne.s32.totalorder %s99, %s101
      %p108 = scmp.eq.s32.totalorder %s23, 2
      %p109 = por %p107, %p108
      %p110 = scmp.ne.s32.totalorder %s101, %s102
      %p111 = scmp.eq.s32.totalorder %s23, 0
      %p112 = por %p110, %p111
      %p113 = scmp.ne.s32.totalorder %s101, %s102
      %p114 = scmp.eq.s32.totalorder %s24, 2
      %p115 = por %p113, %p114
      %p117 = scmp.ne.s32.totalorder %s102, %s116
      %p118 = scmp.eq.s32.totalorder %s24, 0
      %p119 = por %p117, %p118
      %s121 = sadd.s32 %s120, 1
      %p124 = scmp.eq.s32.totalorder %s18, 2
      %p125 = scmp.ne.s32.totalorder %s120, %s122
      %p126 = scmp.eq.s32.totalorder %s18, 0
      %p127 = por %p125, %p126
      %p128 = scmp.ne.s32.totalorder %s120, %s122
      %p129 = scmp.eq.s32.totalorder %s23, 2
      %p130 = por %p128, %p129
      %p131 = scmp.ne.s32.totalorder %s122, %s123
      %p132 = scmp.eq.s32.totalorder %s23, 0
      %p133 = por %p131, %p132
      %p134 = scmp.ne.s32.totalorder %s122, %s123
      %p135 = scmp.eq.s32.totalorder %s24, 2
      %p136 = por %p134, %p135
      %p138 = scmp.ne.s32.totalorder %s123, %s137
      %p139 = scmp.eq.s32.totalorder %s24, 0
      %p140 = por %p138, %p139
      %s142 = sadd.s32 %s141, 1
      %p145 = scmp.eq.s32.totalorder %s18, 2
      %p146 = scmp.ne.s32.totalorder %s141, %s143
      %p147 = scmp.eq.s32.totalorder %s18, 0
      %p148 = por %p146, %p147
      %p149 = scmp.ne.s32.totalorder %s141, %s143
      %p150 = scmp.eq.s32.totalorder %s23, 2
      %p151 = por %p149, %p150
      %p152 = scmp.ne.s32.totalorder %s143, %s144
      %p153 = scmp.eq.s32.totalorder %s23, 0
      %p154 = por %p152, %p153
      %p155 = scmp.ne.s32.totalorder %s143, %s144
      %p156 = scmp.eq.s32.totalorder %s24, 2
      %p157 = por %p155, %p156
      %p159 = scmp.ne.s32.totalorder %s144, %s158
      %p160 = scmp.eq.s32.totalorder %s24, 0
      %p161 = por %p159, %p160
      %s163 = sadd.s32 %s162, 1
      %p166 = scmp.eq.s32.totalorder %s18, 2
      %p167 = scmp.ne.s32.totalorder %s162, %s164
      %p168 = scmp.eq.s32.totalorder %s18, 0
      %p169 = por %p167, %p168
      %p170 = scmp.ne.s32.totalorder %s162, %s164
      %p171 = scmp.eq.s32.totalorder %s23, 2
      %p172 = por %p170, %p171
      %p173 = scmp.ne.s32.totalorder %s164, %s165
      %p174 = scmp.eq.s32.totalorder %s23, 0
      %p175 = por %p173, %p174
      %p176 = scmp.ne.s32.totalorder %s164, %s165
      %p177 = scmp.eq.s32.totalorder %s24, 2
      %p178 = por %p176, %p177
      %p180 = scmp.ne.s32.totalorder %s165, %s179
      %p181 = scmp.eq.s32.totalorder %s24, 0
      %p182 = por %p180, %p181
      %s183 = ssub.s32 %s18, %s25
      %p184 = scmp.eq.s32.totalorder %s183, 0
      %s186 = sadd.s32 %s185, 1
      %s187 = scalar_select %p184, %s185, %s186
      %p190 = pneg %p184
      %p191 = scmp.eq.s32.totalorder %s18, 2
      %p192 = por %p190, %p191
      %p193 = scmp.ne.s32.totalorder %s185, %s188
      %p194 = scmp.eq.s32.totalorder %s18, 0
      %p195 = por %p193, %p194
      %p196 = scmp.ne.s32.totalorder %s185, %s188
      %p197 = scmp.eq.s32.totalorder %s23, 2
      %p198 = por %p196, %p197
      %p199 = scmp.ne.s32.totalorder %s188, %s189
      %p200 = scmp.eq.s32.totalorder %s23, 0
      %p201 = por %p199, %p200
      %p202 = scmp.ne.s32.totalorder %s188, %s189
      %p203 = scmp.eq.s32.totalorder %s24, 2
      %p204 = por %p202, %p203
      %p206 = scmp.ne.s32.totalorder %s189, %s205
      %p207 = scmp.eq.s32.totalorder %s24, 0
      %p208 = por %p206, %p207
      %p209 = scmp.le.s32.totalorder 1, %s18
      %p210 = scmp.lt.s32.totalorder %s18, 4
      %p211 = pnand %p209, %p210
      %p212 = pneg %p211
      // Predicated region
      $region9: #{tpu_custom_call.1} parent=5 // pred_check
        _
      $region10: #{tpu_custom_call.1} parent=5 // pred_check_branch
        %214 = sbr.rel (%p211) target = $region12
      $region11: #{tpu_custom_call.1} parent=5 // pred_region
        %s215 = ssub.s32 %s18, 1
        // Predicated region
        $region13: #{tpu_custom_call.1} parent=11 // pred_check
          %p216 = pneg %p91
        $region14: #{tpu_custom_call.1} parent=11 // pred_check_branch
          %218 = sbr.rel (%p216) target = $region16
        $region15: #{tpu_custom_call.1} parent=11 // pred_region
          %s220 = ssub.s32 1024, 1024
          %221 = vsyncadd [#allocation3], %s220
          %s222 = sshll.u32 [#allocation2], 4
          %s223 = int_to_ptr.vmem [resolvable:$true] %s222
          %228 = dma.hbm_to_vmem [thread:$0]  %s2, 1024, %s223, [#allocation3], 128, 128, 8
        $region16: #{tpu_custom_call.1} parent=11 // pred_fallthru
          _
        // Predicated region
        $region17: #{tpu_custom_call.1} parent=11 // pred_check
          %p229 = pneg %p112
        $region18: #{tpu_custom_call.1} parent=11 // pred_check_branch
          %231 = sbr.rel (%p229) target = $region20
        $region19: #{tpu_custom_call.1} parent=11 // pred_region
          _
        $region20: #{tpu_custom_call.1} parent=11 // pred_fallthru
          _
        // Predicated region
        $region21: #{tpu_custom_call.1} parent=11 // pred_check
          %p232 = pneg %p133
        $region22: #{tpu_custom_call.1} parent=11 // pred_check_branch
          %234 = sbr.rel (%p232) target = $region24
        $region23: #{tpu_custom_call.1} parent=11 // pred_region
          _
        $region24: #{tpu_custom_call.1} parent=11 // pred_fallthru
          _
        // Predicated region
        $region25: #{tpu_custom_call.1} parent=11 // pred_check
          %p235 = pneg %p154
        $region26: #{tpu_custom_call.1} parent=11 // pred_check_branch
          %237 = sbr.rel (%p235) target = $region28
        $region27: #{tpu_custom_call.1} parent=11 // pred_region
          %s239 = ssub.s32 2048, 2048
          %240 = vsyncadd [#allocation6], %s239
          %s241 = sshll.u32 [#allocation5], 4
          %s242 = int_to_ptr.vmem [resolvable:$true] %s241
          %247 = dma.hbm_to_vmem [thread:$0]  %s5, 2048, %s242, [#allocation6], 128, 128, 8
        $region28: #{tpu_custom_call.1} parent=11 // pred_fallthru
          _
        // Predicated region
        $region29: #{tpu_custom_call.1} parent=11 // pred_check
          %p248 = pneg %p175
        $region30: #{tpu_custom_call.1} parent=11 // pred_check_branch
          %250 = sbr.rel (%p248) target = $region32
        $region31: #{tpu_custom_call.1} parent=11 // pred_region
          _
        $region32: #{tpu_custom_call.1} parent=11 // pred_fallthru
          _
      $region12: #{tpu_custom_call.1} parent=5 // pred_fallthru
        _
      %p251 = scmp.lt.s32.totalorder %s18, 3
      // Predicated region
      $region33: #{tpu_custom_call.1} parent=5 // pred_check
        %p252 = pneg %p251
      $region34: #{tpu_custom_call.1} parent=5 // pred_check_branch
        %254 = sbr.rel (%p252) target = $region36
      $region35: #{tpu_custom_call.1} parent=5 // pred_region
        // Predicated region
        $region37: #{tpu_custom_call.1} parent=35 // pred_check
          %p255 = pneg %p38
        $region38: #{tpu_custom_call.1} parent=35 // pred_check_branch
          %257 = sbr.rel (%p255) target = $region40
        $region39: #{tpu_custom_call.1} parent=35 // pred_region
          %p258 = scmp.lt.s32.totalorder %s18, 2
          %s259 = scalar_select %p258, %s18, 2
          %s260 = smul.addr %s259, 8
          %s261 = scalar_lea.vmem %s0, %s260
        $region40: #{tpu_custom_call.1} parent=35 // pred_fallthru
          _
        // Predicated region
        $region41: #{tpu_custom_call.1} parent=35 // pred_check
          %p262 = pneg %p64
        $region42: #{tpu_custom_call.1} parent=35 // pred_check_branch
          %264 = sbr.rel (%p262) target = $region44
        $region43: #{tpu_custom_call.1} parent=35 // pred_region
          %p265 = scmp.lt.s32.totalorder %s18, 2
          %s266 = scalar_select %p265, %s18, 2
          %s267 = smul.addr %s266, 8
          %s268 = scalar_lea.vmem %s1, %s267
        $region44: #{tpu_custom_call.1} parent=35 // pred_fallthru
          _
      $region36: #{tpu_custom_call.1} parent=5 // pred_fallthru
        _
      %p269 = scmp.le.s32.totalorder 1, %s18
      %p270 = scmp.lt.s32.totalorder %s18, 4
      %p271 = pnand %p269, %p270
      %p272 = pneg %p271
      // Predicated region
      $region45: #{tpu_custom_call.1} parent=5 // pred_check
        _
      $region46: #{tpu_custom_call.1} parent=5 // pred_check_branch
        %274 = sbr.rel (%p271) target = $region48
      $region47: #{tpu_custom_call.1} parent=5 // pred_region
        %s275 = ssub.s32 %s18, 1
        // Predicated region
        $region49: #{tpu_custom_call.1} parent=47 // pred_check
          %p276 = pneg %p91
        $region50: #{tpu_custom_call.1} parent=47 // pred_check_branch
          %278 = sbr.rel (%p276) target = $region52
        $region51: #{tpu_custom_call.1} parent=47 // pred_region
          %279 = dma.done [#allocation3], 1024
        $region52: #{tpu_custom_call.1} parent=47 // pred_fallthru
          _
        // Predicated region
        $region53: #{tpu_custom_call.1} parent=47 // pred_check
          %p280 = pneg %p154
        $region54: #{tpu_custom_call.1} parent=47 // pred_check_branch
          %282 = sbr.rel (%p280) target = $region56
        $region55: #{tpu_custom_call.1} parent=47 // pred_region
          %283 = dma.done [#allocation6], 2048
        $region56: #{tpu_custom_call.1} parent=47 // pred_fallthru
          _
        %p284 = scmp.lt.s32.totalorder %s23, 2
        %s285 = scalar_select %p284, %s23, 2
        %s286 = smul.addr %s285, 8
        %s287 = scalar_lea.vmem %s0, %s286
        %p288 = pneg %p44
        %p289 = pneg %p41
        %p290 = scmp.lt.s32.totalorder %s23, 2
        %s291 = scalar_select %p290, %s23, 2
        %s292 = smul.addr %s291, 8
        %s293 = scalar_lea.vmem %s1, %s292
        %p294 = pneg %p70
        %p295 = pneg %p67
        %p296 = pneg %p91
        %p297 = pneg %p88
        %p298 = pneg %p112
        %p299 = pneg %p109
        %p300 = pneg %p133
        %p301 = pneg %p130
        %p302 = pneg %p154
        %p303 = pneg %p151
        %p304 = pneg %p175
        %p305 = pneg %p172
        %p306 = pneg %p201
        %p307 = pneg %p198
        %s308 = sand.u32 %s188, 1
        %s309 = scalar_lea.sflag [#allocation4], %s308
        %s310 = sand.u32 %s188, 1
        %s311 = smul.addr %s310, 8
        %s312 = scalar_lea.vmem [#allocation7], %s311
        %p313 = scmp.lt.s32.totalorder %s23, 2
        %s314 = scalar_select %p313, %s23, 2
        %s315 = smul.addr %s314, 8
        %s316 = scalar_lea.vmem %s0, %s315
        %p317 = scmp.lt.s32.totalorder %s23, 2
        %s318 = scalar_select %p317, %s23, 2
        %s319 = smul.addr %s318, 8
        %s320 = scalar_lea.vmem %s1, %s319
        %v321 = vld [vmem:[%s316] sm:$0xff]
        %v322 = vld [vmem:[#allocation2] sm:$0xff]
        %v323 = vld [vmem:[#allocation2 + $0x8] sm:$0xff]
        %v324 = vld [vmem:[#allocation2 + $0x10] sm:$0xff]
        %v325 = vld [vmem:[#allocation2 + $0x18] sm:$0xff]
        %v326 = vld [vmem:[#allocation2 + $0x20] sm:$0xff]
        %v327 = vld [vmem:[#allocation2 + $0x28] sm:$0xff]
        %v328 = vld [vmem:[#allocation2 + $0x30] sm:$0xff]
        %v329 = vld [vmem:[#allocation2 + $0x38] sm:$0xf]
        %v330 = vld [vmem:[%s320] sm:$0xff]
        %v331 = vld [vmem:[%s3] sm:$0xf]
        %vm332 = vcmask 31744
        %v334 = vsel %vm332, %v330, 0
        %vm336 = vcmask 1043456
        %v338 = vsel %vm336, %v331, 0
        %340 = vmatprep.subr.mxu0 0.0
        %341 = vmatpush1.msra.mxu0 %v338
        %342 = vmatprep.subr.mxu0 0.0
        %343 = vmatpush1.msra.mxu0 0.0
        %344 = vmatprep.subr.mxu0 0.0
        %345 = vmatpush1.msra.mxu0 0.0
        %346 = vmatprep.subr.mxu0 0.0
        %347 = vmatpush1.msra.mxu0 0.0
        %348 = vmatprep.subr.mxu0 0.0
        %349 = vmatpush1.msra.mxu0 0.0
        %350 = vmatprep.subr.mxu0 0.0
        %351 = vmatpush1.msra.mxu0 0.0
        %352 = vmatprep.subr.mxu0 0.0
        %353 = vmatpush1.msra.mxu0 0.0
        %354 = vmatprep.subr.mxu0 0.0
        %355 = vmatpush1.msra.mxu0 0.0
        %356 = vmatprep.subr.mxu0 0.0
        %357 = vmatpush1.msra.mxu0 0.0
        %358 = vmatprep.subr.mxu0 0.0
        %359 = vmatpush1.msra.mxu0 0.0
        %360 = vmatprep.subr.mxu0 0.0
        %361 = vmatpush1.msra.mxu0 0.0
        %362 = vmatprep.subr.mxu0 0.0
        %363 = vmatpush1.msra.mxu0 0.0
        %364 = vmatprep.subr.mxu0 0.0
        %365 = vmatpush1.msra.mxu0 0.0
        %366 = vmatprep.subr.mxu0 0.0
        %367 = vmatpush1.msra.mxu0 0.0
        %368 = vmatprep.subr.mxu0 0.0
        %369 = vmatpush1.msra.mxu0 0.0
        %370 = vmatprep.subr.mxu0 0.0
        %371 = vmatpush1.msra.mxu0 0.0
        %372 = vmatprep.subr.mxu0 0.0
        %373 = vmatpush1.msra.mxu0 0.0
        %374 = vmatprep.subr.mxu0 0.0
        %375 = vmatpush1.msra.mxu0 0.0
        %376 = vmatprep.subr.mxu0 0.0
        %377 = vmatpush1.msra.mxu0 0.0
        %378 = vmatprep.subr.mxu0 0.0
        %379 = vmatpush1.msra.mxu0 0.0
        %380 = vmatprep.subr.mxu0 0.0
        %381 = vmatpush1.msra.mxu0 0.0
        %382 = vmatprep.subr.mxu0 0.0
        %383 = vmatpush1.msra.mxu0 0.0
        %384 = vmatprep.subr.mxu0 0.0
        %385 = vmatpush1.msra.mxu0 0.0
        %386 = vmatprep.subr.mxu0 0.0
        %387 = vmatpush1.msra.mxu0 0.0
        %388 = vmatprep.subr.mxu0 0.0
        %389 = vmatpush1.msra.mxu0 0.0
        %390 = vmatprep.subr.mxu0 0.0
        %391 = vmatpush1.msra.mxu0 0.0
        %392 = vmatprep.subr.mxu0 0.0
        %393 = vmatpush1.msra.mxu0 0.0
        %394 = vmatprep.subr.mxu0 0.0
        %395 = vmatpush1.msra.mxu0 0.0
        %396 = vmatprep.subr.mxu0 0.0
        %397 = vmatpush1.msra.mxu0 0.0
        %398 = vmatprep.subr.mxu0 0.0
        %399 = vmatpush1.msra.mxu0 0.0
        %400 = vmatprep.subr.mxu0 0.0
        %401 = vmatpush1.msra.mxu0 0.0
        %402 = vmatprep.subr.mxu0 0.0
        %403 = vmatpush1.msra.mxu0 0.0
        %404 = vmatprep.mubr.f32.mxu0 0.0
        %405 = vmatmul.mubr.f32.gmra.mrb[0].mxu0 %v334
        %v406 = vpop.f32.mrb[0].mxu0
        %v407 = vadd.f32 0.0, %v406
        %v408 = vpop.f32.mrb[0].mxu0
        %409 = vdwg.mxu0
        %vm410 = vcmask 490496
        %v412 = vsel %vm410, %v321, 0
        %v415 = vsel %vm336, %v329, 0
        %417 = vmatprep.subr.mxu0 0.0
        %418 = vmatpush1.msra.mxu0 %v322
        %419 = vmatprep.subr.mxu0 0.0
        %420 = vmatpush1.msra.mxu0 %v323
        %421 = vmatprep.subr.mxu0 0.0
        %422 = vmatpush1.msra.mxu0 %v324
        %423 = vmatprep.subr.mxu0 0.0
        %424 = vmatpush1.msra.mxu0 %v325
        %425 = vmatprep.subr.mxu0 0.0
        %426 = vmatpush1.msra.mxu0 %v326
        %427 = vmatprep.subr.mxu0 0.0
        %428 = vmatpush1.msra.mxu0 %v327
        %429 = vmatprep.subr.mxu0 0.0
        %430 = vmatpush1.msra.mxu0 %v328
        %431 = vmatprep.subr.mxu0 0.0
        %432 = vmatpush1.msra.mxu0 %v415
        %433 = vmatprep.subr.mxu0 0.0
        %434 = vmatpush1.msra.mxu0 0.0
        %435 = vmatprep.subr.mxu0 0.0
        %436 = vmatpush1.msra.mxu0 0.0
        %437 = vmatprep.subr.mxu0 0.0
        %438 = vmatpush1.msra.mxu0 0.0
        %439 = vmatprep.subr.mxu0 0.0
        %440 = vmatpush1.msra.mxu0 0.0
        %441 = vmatprep.subr.mxu0 0.0
        %442 = vmatpush1.msra.mxu0 0.0
        %443 = vmatprep.subr.mxu0 0.0
        %444 = vmatpush1.msra.mxu0 0.0
        %445 = vmatprep.subr.mxu0 0.0
        %446 = vmatpush1.msra.mxu0 0.0
        %447 = vmatprep.subr.mxu0 0.0
        %448 = vmatpush1.msra.mxu0 0.0
        %449 = vmatprep.subr.mxu0 0.0
        %450 = vmatpush1.msra.mxu0 0.0
        %451 = vmatprep.subr.mxu0 0.0
        %452 = vmatpush1.msra.mxu0 0.0
        %453 = vmatprep.subr.mxu0 0.0
        %454 = vmatpush1.msra.mxu0 0.0
        %455 = vmatprep.subr.mxu0 0.0
        %456 = vmatpush1.msra.mxu0 0.0
        %457 = vmatprep.subr.mxu0 0.0
        %458 = vmatpush1.msra.mxu0 0.0
        %459 = vmatprep.subr.mxu0 0.0
        %460 = vmatpush1.msra.mxu0 0.0
        %461 = vmatprep.subr.mxu0 0.0
        %462 = vmatpush1.msra.mxu0 0.0
        %463 = vmatprep.subr.mxu0 0.0
        %464 = vmatpush1.msra.mxu0 0.0
        %465 = vmatprep.subr.mxu0 0.0
        %466 = vmatpush1.msra.mxu0 0.0
        %467 = vmatprep.subr.mxu0 0.0
        %468 = vmatpush1.msra.mxu0 0.0
        %469 = vmatprep.subr.mxu0 0.0
        %470 = vmatpush1.msra.mxu0 0.0
        %471 = vmatprep.subr.mxu0 0.0
        %472 = vmatpush1.msra.mxu0 0.0
        %473 = vmatprep.subr.mxu0 0.0
        %474 = vmatpush1.msra.mxu0 0.0
        %475 = vmatprep.subr.mxu0 0.0
        %476 = vmatpush1.msra.mxu0 0.0
        %477 = vmatprep.subr.mxu0 0.0
        %478 = vmatpush1.msra.mxu0 0.0
        %479 = vmatprep.subr.mxu0 0.0
        %480 = vmatpush1.msra.mxu0 0.0
        %481 = vmatprep.mubr.f32.mxu0 0.0
        %482 = vmatmul.mubr.f32.gmra.mrb[0].mxu0 %v412
        %v483 = vpop.f32.mrb[0].mxu0
        %v484 = vadd.f32 %v407, %v483
        %v485 = vpop.f32.mrb[0].mxu0
        %486 = vdwg.mxu0
        %v487 = vld [vmem:[%s4] sm:$0x1]
        %v489 = vlaneseq
        %v490 = vshrl.u32 %v489, 7
        %v491 = vsub.s32 0, %v490
        %v492 = vrot.slane %v487, %v491
        %v494 = vadd.f32 %v484, %v492
        %v495 = vmax.f32 %v494, 0.0
        %v496 = vld [vmem:[#allocation5] sm:$0xff]
        %v497 = vld [vmem:[#allocation5 + $0x8] sm:$0xff]
        %v498 = vld [vmem:[#allocation5 + $0x10] sm:$0xff]
        %v499 = vld [vmem:[#allocation5 + $0x18] sm:$0xff]
        %v500 = vld [vmem:[#allocation5 + $0x20] sm:$0xff]
        %v501 = vld [vmem:[#allocation5 + $0x28] sm:$0xff]
        %v502 = vld [vmem:[#allocation5 + $0x30] sm:$0xff]
        %v503 = vld [vmem:[#allocation5 + $0x38] sm:$0xff]
        %v504 = vld [vmem:[#allocation5 + $0x40] sm:$0xff]
        %v505 = vld [vmem:[#allocation5 + $0x48] sm:$0xff]
        %v506 = vld [vmem:[#allocation5 + $0x50] sm:$0xff]
        %v507 = vld [vmem:[#allocation5 + $0x58] sm:$0xff]
        %v508 = vld [vmem:[#allocation5 + $0x60] sm:$0xff]
        %v509 = vld [vmem:[#allocation5 + $0x68] sm:$0xff]
        %v510 = vld [vmem:[#allocation5 + $0x70] sm:$0xff]
        %v511 = vld [vmem:[#allocation5 + $0x78] sm:$0xff]
        %v512 = vld [vmem:[%s6] sm:$0x1]
        %v514 = vlaneseq
        %v515 = vshrl.u32 %v514, 7
        %v516 = vsub.s32 0, %v515
        %v517 = vrot.slane %v512, %v516
        %519 = vmatprep.subr.mxu0 0.0
        %520 = vmatpush1.msra.mxu0 %v496
        %521 = vmatprep.subr.mxu0 0.0
        %522 = vmatpush1.msra.mxu0 %v497
        %523 = vmatprep.subr.mxu0 0.0
        %524 = vmatpush1.msra.mxu0 %v498
        %525 = vmatprep.subr.mxu0 0.0
        %526 = vmatpush1.msra.mxu0 %v499
        %527 = vmatprep.subr.mxu0 0.0
        %528 = vmatpush1.msra.mxu0 %v500
        %529 = vmatprep.subr.mxu0 0.0
        %530 = vmatpush1.msra.mxu0 %v501
        %531 = vmatprep.subr.mxu0 0.0
        %532 = vmatpush1.msra.mxu0 %v502
        %533 = vmatprep.subr.mxu0 0.0
        %534 = vmatpush1.msra.mxu0 %v503
        %535 = vmatprep.subr.mxu0 0.0
        %536 = vmatpush1.msra.mxu0 %v504
        %537 = vmatprep.subr.mxu0 0.0
        %538 = vmatpush1.msra.mxu0 %v505
        %539 = vmatprep.subr.mxu0 0.0
        %540 = vmatpush1.msra.mxu0 %v506
        %541 = vmatprep.subr.mxu0 0.0
        %542 = vmatpush1.msra.mxu0 %v507
        %543 = vmatprep.subr.mxu0 0.0
        %544 = vmatpush1.msra.mxu0 %v508
        %545 = vmatprep.subr.mxu0 0.0
        %546 = vmatpush1.msra.mxu0 %v509
        %547 = vmatprep.subr.mxu0 0.0
        %548 = vmatpush1.msra.mxu0 %v510
        %549 = vmatprep.subr.mxu0 0.0
        %550 = vmatpush1.msra.mxu0 %v511
        %551 = vmatprep.subr.mxu0 0.0
        %552 = vmatpush1.msra.mxu0 0.0
        %553 = vmatprep.subr.mxu0 0.0
        %554 = vmatpush1.msra.mxu0 0.0
        %555 = vmatprep.subr.mxu0 0.0
        %556 = vmatpush1.msra.mxu0 0.0
        %557 = vmatprep.subr.mxu0 0.0
        %558 = vmatpush1.msra.mxu0 0.0
        %559 = vmatprep.subr.mxu0 0.0
        %560 = vmatpush1.msra.mxu0 0.0
        %561 = vmatprep.subr.mxu0 0.0
        %562 = vmatpush1.msra.mxu0 0.0
        %563 = vmatprep.subr.mxu0 0.0
        %564 = vmatpush1.msra.mxu0 0.0
        %565 = vmatprep.subr.mxu0 0.0
        %566 = vmatpush1.msra.mxu0 0.0
        %567 = vmatprep.subr.mxu0 0.0
        %568 = vmatpush1.msra.mxu0 0.0
        %569 = vmatprep.subr.mxu0 0.0
        %570 = vmatpush1.msra.mxu0 0.0
        %571 = vmatprep.subr.mxu0 0.0
        %572 = vmatpush1.msra.mxu0 0.0
        %573 = vmatprep.subr.mxu0 0.0
        %574 = vmatpush1.msra.mxu0 0.0
        %575 = vmatprep.subr.mxu0 0.0
        %576 = vmatpush1.msra.mxu0 0.0
        %577 = vmatprep.subr.mxu0 0.0
        %578 = vmatpush1.msra.mxu0 0.0
        %579 = vmatprep.subr.mxu0 0.0
        %580 = vmatpush1.msra.mxu0 0.0
        %581 = vmatprep.subr.mxu0 0.0
        %582 = vmatpush1.msra.mxu0 0.0
        %583 = vmatprep.mubr.f32.mxu0 0.0
        %584 = vmatmul.mubr.f32.gmra.mrb[0].mxu0 %v495
        %v585 = vpop.f32.mrb[0].mxu0
        %v586 = vadd.f32 %v517, %v585
        %v587 = vpop.f32.mrb[0].mxu0
        %588 = vdwg.mxu0
        %v589 = vmax.f32 %v586, 0.0
        %590 = vst [vmem:[%s312] sm:$0xff] %v589
        %s591 = sand.u32 %s188, 1
        %s592 = scalar_lea.sflag [#allocation4], %s591
        %s593 = sand.u32 %s188, 1
        %s594 = smul.addr %s593, 8
        %s595 = scalar_lea.vmem [#allocation7], %s594
        // Predicated region
        $region57: #{tpu_custom_call.1} parent=47 // pred_check
          %p596 = pneg %p198
        $region58: #{tpu_custom_call.1} parent=47 // pred_check_branch
          %598 = sbr.rel (%p596) target = $region60
        $region59: #{tpu_custom_call.1} parent=47 // pred_region
          %s600 = ssub.s32 128, 128
          %601 = vsyncadd %s592, %s600
          %s602 = smul.addr %s23, 128
          %s603 = scalar_lea.hbm %s7, %s602
          %s605 = sshll.u32 %s595, 4
          %s606 = int_to_ptr.vmem [resolvable:$true] %s605
          %608 = dma.vmem_to_hbm [thread:$0]  %s606, 128, %s603, %s592
        $region60: #{tpu_custom_call.1} parent=47 // pred_fallthru
          _
      $region48: #{tpu_custom_call.1} parent=5 // pred_fallthru
        _
      %p609 = scmp.le.s32.totalorder 2, %s18
      // Predicated region
      $region61: #{tpu_custom_call.1} parent=5 // pred_check
        %p610 = pneg %p609
      $region62: #{tpu_custom_call.1} parent=5 // pred_check_branch
        %612 = sbr.rel (%p610) target = $region64
      $region63: #{tpu_custom_call.1} parent=5 // pred_region
        %s613 = ssub.s32 %s18, 2
        // Predicated region
        $region65: #{tpu_custom_call.1} parent=63 // pred_check
          %p614 = pneg %p204
        $region66: #{tpu_custom_call.1} parent=63 // pred_check_branch
          %616 = sbr.rel (%p614) target = $region68
        $region67: #{tpu_custom_call.1} parent=63 // pred_region
          %s617 = sand.u32 %s189, 1
          %s618 = scalar_lea.sflag [#allocation4], %s617
          %s619 = sand.u32 %s189, 1
          %s620 = smul.addr %s619, 8
          %s621 = scalar_lea.vmem [#allocation7], %s620
          %622 = dma.done %s618, 128
        $region68: #{tpu_custom_call.1} parent=63 // pred_fallthru
          _
      $region64: #{tpu_custom_call.1} parent=5 // pred_fallthru
        _
    $region6: #{tpu_custom_call.1} parent=1 // loop_footer
      %s22 = sadd.s32 1, %s18
    $region7: #{tpu_custom_call.1} parent=1 // loop_footer_branch
      %17 = sbr.rel target = $region3
    $region8: #{tpu_custom_call.1} parent=1 // loop_exit
      _
    %623 = vsyncpa [#allocation3], 1
    %s624 = scalar_lea.sflag [#allocation3], 1
    %625 = vsyncpa %s624, 1
    %626 = vsyncpa [#allocation6], 1
    %627 = vsyncpa [#allocation4], 1
    %s628 = scalar_lea.sflag [#allocation4], 1
    %629 = vsyncpa %s628, 1

</llo_original>
